<compile_context>
chip_gen: v7x
topology: tpu7x:2x2x1
jax: 0.10.0
libtpu: 0.0.40
codegen_flags: <defaults>
</compile_context>

<pallas_src>
import functools

import jax
import jax.numpy as jnp
from jax.experimental import pallas as pl
from jax.experimental.pallas import tpu as pltpu


def _tversky_kernel(yp_ref, yt_ref, out_ref, *, n_rows, needs_mask):
    """Accumulate per-sample lane-partials [sum(p*yt), sum(p), sum(yt)].

    yp_ref : (2, TR, 128) logits (channel 0 / channel 1) of the current sample.
    yt_ref : (TR, 128)    targets.
    out_ref: (1, 3, 128)  f32 lane-wise partial sums, resident across the
                          reduction grid axis (accumulator pattern).
    """
    j = pl.program_id(1)

    @pl.when(j == 0)
    def _():
        out_ref[...] = jnp.zeros_like(out_ref)

    x0 = yp_ref[0].astype(jnp.float32)      # (TR, 128)
    x1 = yp_ref[1].astype(jnp.float32)      # (TR, 128)
    yt = yt_ref[...].astype(jnp.float32)    # (TR, 128)  (cast in-kernel)

    # softmax over the 2-channel axis, keep channel 1:
    #   exp(x1) / (exp(x0) + exp(x1)) = 1 / (1 + exp(x0 - x1))
    # Saturates cleanly: exp -> inf gives p == 0, exp -> 0 gives p == 1.
    p = 1.0 / (1.0 + jnp.exp(x0 - x1))

    if needs_mask:
        # Last row-block may run past the real data (grid uses cdiv): zero it.
        tr = yt_ref.shape[0]
        row = jax.lax.broadcasted_iota(jnp.int32, (tr, 1), 0) + j * tr
        valid = row < n_rows
        p = jnp.where(valid, p, 0.0)
        yt = jnp.where(valid, yt, 0.0)

    # Sublane-direction partial sums only; cross-lane reduce is deferred to the
    # (tiny) JAX epilogue.
    out_ref[0, 0, :] += jnp.sum(p * yt, axis=0)   # -> tp after lane reduce
    out_ref[0, 1, :] += jnp.sum(p, axis=0)        # -> sum(p)
    out_ref[0, 2, :] += jnp.sum(yt, axis=0)       # -> sum(yt)


def tversky_loss(y_pred, y_true, beta, *, max_rows_per_block=2048):
    """y_pred: [B, 2, H, W] logits, y_true: [B, H, W] targets -> scalar loss."""
    B, C, H, W = y_pred.shape
    assert C == 2, "two_class_prob expects exactly 2 channels"
    N = H * W

    # Free, contiguous reshapes only (no channel slicing, no dtype cast).
    yp = y_pred.reshape(B, 2, N)
    yt = y_true.reshape(B, N)

    pad = (-N) % 128
    if pad:
        # Rare fallback (N not a multiple of 128): pad channel-0 logits high and
        # channel-1 low so the padded softmax prob is exactly 0, targets 0.
        pad0 = jnp.full((B, 1, pad), 1e4, dtype=yp.dtype)
        pad1 = jnp.full((B, 1, pad), -1e4, dtype=yp.dtype)
        yp = jnp.concatenate([yp, jnp.concatenate([pad0, pad1], axis=1)], axis=2)
        yt = jnp.concatenate([yt, jnp.zeros((B, pad), dtype=yt.dtype)], axis=1)
    Np = N + pad
    R = Np // 128                       # 128-lane rows per sample

    yp = yp.reshape(B, 2, R, 128)
    yt = yt.reshape(B, R, 128)

    TR = min(R, max_rows_per_block)     # sublane-dense tile height
    J = pl.cdiv(R, TR)                  # reduction steps per sample
    needs_mask = (R % TR) != 0

    kernel = functools.partial(_tversky_kernel, n_rows=R, needs_mask=needs_mask)

    partials = pl.pallas_call(
        kernel,
        out_shape=jax.ShapeDtypeStruct((B, 3, 128), jnp.float32),
        grid_spec=pltpu.PrefetchScalarGridSpec(
            num_scalar_prefetch=0,
            grid=(B, J),
            in_specs=[
                # Both channels of one sample, TR rows of 128 lanes.
                pl.BlockSpec((None, 2, TR, 128), lambda b, j: (b, 0, j, 0)),
                pl.BlockSpec((None, TR, 128), lambda b, j: (b, j, 0)),
            ],
            out_specs=pl.BlockSpec((1, 3, 128), lambda b, j: (b, 0, 0)),
        ),
        compiler_params=pltpu.CompilerParams(
            dimension_semantics=("parallel", "arbitrary"),
            vmem_limit_bytes=32 * 1024 * 1024,
        ),
    )(yp, yt)

    # Tiny plain-JAX epilogue: final cross-lane reduction + Tversky index.
    sums = jnp.sum(partials, axis=-1)        # (B, 3): [tp, sum(p), sum(yt)]
    tp = sums[:, 0]
    fn = sums[:, 2] - tp                     # sum((1 - p) * yt)
    fp = sums[:, 1] - tp                     # sum(p * (1 - yt))
    ti = (tp + 1.0) / (1.0 + tp + beta * fn + (1.0 - beta) * fp)   # addone=True
    return jnp.mean(1.0 - ti)


def _reference_loss(y_pred, y_true, beta):
    # pure-JAX reference of the PyTorch forward
    p = jax.nn.softmax(y_pred, axis=1)[:, 1, :, :]
    B = p.shape[0]
    p = p.reshape(B, -1)
    t = y_true.reshape(B, -1).astype(jnp.float32)
    tp = jnp.sum(p * t, axis=1)
    fn = jnp.sum((1 - p) * t, axis=1)
    fp = jnp.sum(p * (1 - t), axis=1)
    ti = (tp + 1.0) / (1.0 + tp + beta * fn + (1 - beta) * fp)
    return jnp.mean(1.0 - ti)


if __name__ == "__main__":
    key = jax.random.PRNGKey(0)
    beta = 0.7

    # Small check matching the PyTorch module's layout.
    k1, k2 = jax.random.split(key)
    B, C, H, W = 2, 2, 16, 16
    y_pred = jax.random.normal(k1, (B, C, H, W), dtype=jnp.float32)
    y_true = (jax.random.uniform(k2, (B, H, W)) > 0.5).astype(jnp.float32)

    loss = jax.block_until_ready(tversky_loss(y_pred, y_true, beta))
    ref = jax.block_until_ready(_reference_loss(y_pred, y_true, beta))
    assert jnp.allclose(loss, ref, rtol=1e-5, atol=1e-6), (loss, ref)

    # Secondary check exercising the multi-block reduction, partial-block
    # masking and the (rare) 128-lane pad fallback.
    k3, k4 = jax.random.split(jax.random.PRNGKey(1))
    B2, H2, W2 = 1, 520, 520            # N = 270400 -> pad=64, R=2113, J=2
    y_pred2 = jax.random.normal(k3, (B2, 2, H2, W2), dtype=jnp.float32)
    y_true2 = (jax.random.uniform(k4, (B2, H2, W2)) > 0.5).astype(jnp.float32)
    loss2 = jax.block_until_ready(tversky_loss(y_pred2, y_true2, beta))
    ref2 = jax.block_until_ready(_reference_loss(y_pred2, y_true2, beta))
    assert jnp.allclose(loss2, ref2, rtol=1e-3, atol=1e-5), (loss2, ref2)

    print("KERNEL_OK")
</pallas_src>

<mosaic_0001>
module attributes {stable_mosaic.version = 11 : i64} {
  func.func @_tversky_kernel(%arg0: i32, %arg1: i32, %arg2: memref<1x2x2x128xf32, #tpu.memory_space<vmem>>, %arg3: memref<1x2x128xf32, #tpu.memory_space<vmem>>, %arg4: memref<1x3x128xf32, #tpu.memory_space<vmem>>) attributes {dimension_semantics = [#tpu.dimension_semantics<parallel>, #tpu.dimension_semantics<arbitrary>], iteration_bounds = array<i64: 2, 1>, scalar_prefetch = 0 : i64, scratch_operands = 0 : i64, tpu.core_type = #tpu.core_type<tc>, window_params = [{transform_indices = @transform_0, window_bounds = array<i64: 1, 2, 2, 128>}, {transform_indices = @transform_1, window_bounds = array<i64: 1, 2, 128>}, {transform_indices = @transform_2, window_bounds = array<i64: 1, 3, 128>}]} {
    %c0_i32 = arith.constant 0 : i32
    %0 = arith.cmpi eq, %arg1, %c0_i32 : i32
    %1 = arith.extui %0 : i1 to i32
    %c0_i32_0 = arith.constant 0 : i32
    %2 = arith.cmpi ne, %1, %c0_i32_0 : i32
    scf.if %2 {
      %cst_31 = arith.constant 0.000000e+00 : f32
      %37 = vector.broadcast %cst_31 : f32 to vector<1x3x128xf32>
      %c0_32 = arith.constant 0 : index
      %c0_33 = arith.constant 0 : index
      %c0_34 = arith.constant 0 : index
      %38 = vector.load %arg4[%c0_32, %c0_33, %c0_34] : memref<1x3x128xf32, #tpu.memory_space<vmem>>, vector<1x3x128xf32>
      tpu.vector_store %arg4[%c0_32, %c0_33, %c0_34], %37 {strides = array<i32>} : memref<1x3x128xf32, #tpu.memory_space<vmem>>, vector<1x3x128xf32>,
    } else {
    }
    %c0 = arith.constant 0 : index
    %c0_1 = arith.constant 0 : index
    %c0_2 = arith.constant 0 : index
    %c0_3 = arith.constant 0 : index
    %3 = vector.load %arg2[%c0, %c0_1, %c0_2, %c0_3] : memref<1x2x2x128xf32, #tpu.memory_space<vmem>>, vector<1x1x2x128xf32>
    %4 = vector.shape_cast %3 : vector<1x1x2x128xf32> to vector<2x128xf32>
    %c0_4 = arith.constant 0 : index
    %c1 = arith.constant 1 : index
    %c0_5 = arith.constant 0 : index
    %c0_6 = arith.constant 0 : index
    %5 = vector.load %arg2[%c0_4, %c1, %c0_5, %c0_6] : memref<1x2x2x128xf32, #tpu.memory_space<vmem>>, vector<1x1x2x128xf32>
    %6 = vector.shape_cast %5 : vector<1x1x2x128xf32> to vector<2x128xf32>
    %c0_7 = arith.constant 0 : index
    %c0_8 = arith.constant 0 : index
    %c0_9 = arith.constant 0 : index
    %7 = vector.load %arg3[%c0_7, %c0_8, %c0_9] : memref<1x2x128xf32, #tpu.memory_space<vmem>>, vector<1x2x128xf32>
    %8 = vector.shape_cast %7 : vector<1x2x128xf32> to vector<2x128xf32>
    %9 = arith.subf %4, %6 : vector<2x128xf32>
    %10 = math.exp %9 : vector<2x128xf32>
    %cst = arith.constant 1.000000e+00 : f32
    %11 = vector.broadcast %cst : f32 to vector<2x128xf32>
    %12 = arith.addf %11, %10 : vector<2x128xf32>
    %cst_10 = arith.constant 1.000000e+00 : f32
    %13 = vector.broadcast %cst_10 : f32 to vector<2x128xf32>
    %14 = arith.divf %13, %12 : vector<2x128xf32>
    %c0_11 = arith.constant 0 : index
    %c0_12 = arith.constant 0 : index
    %c0_13 = arith.constant 0 : index
    %15 = vector.load %arg4[%c0_11, %c0_12, %c0_13] : memref<1x3x128xf32, #tpu.memory_space<vmem>>, vector<1x1x128xf32>
    %16 = vector.shape_cast %15 : vector<1x1x128xf32> to vector<128xf32>
    %17 = arith.mulf %14, %8 : vector<2x128xf32>
    %cst_14 = arith.constant dense<0.000000e+00> : vector<128xf32>
    %18 = vector.multi_reduction <add>, %17, %cst_14 [0] : vector<2x128xf32> to vector<128xf32>
    %19 = arith.addf %16, %18 : vector<128xf32>
    %c0_15 = arith.constant 0 : index
    %c0_16 = arith.constant 0 : index
    %c0_17 = arith.constant 0 : index
    %20 = vector.load %arg4[%c0_15, %c0_16, %c0_17] : memref<1x3x128xf32, #tpu.memory_space<vmem>>, vector<1x1x128xf32>
    %21 = vector.shape_cast %20 : vector<1x1x128xf32> to vector<128xf32>
    %22 = vector.shape_cast %19 : vector<128xf32> to vector<1x1x128xf32>
    tpu.vector_store %arg4[%c0_15, %c0_16, %c0_17], %22 {strides = array<i32>} : memref<1x3x128xf32, #tpu.memory_space<vmem>>, vector<1x1x128xf32>,
    %c0_18 = arith.constant 0 : index
    %c1_19 = arith.constant 1 : index
    %c0_20 = arith.constant 0 : index
    %23 = vector.load %arg4[%c0_18, %c1_19, %c0_20] : memref<1x3x128xf32, #tpu.memory_space<vmem>>, vector<1x1x128xf32>
    %24 = vector.shape_cast %23 : vector<1x1x128xf32> to vector<128xf32>
    %cst_21 = arith.constant dense<0.000000e+00> : vector<128xf32>
    %25 = vector.multi_reduction <add>, %14, %cst_21 [0] : vector<2x128xf32> to vector<128xf32>
    %26 = arith.addf %24, %25 : vector<128xf32>
    %c0_22 = arith.constant 0 : index
    %c1_23 = arith.constant 1 : index
    %c0_24 = arith.constant 0 : index
    %27 = vector.load %arg4[%c0_22, %c1_23, %c0_24] : memref<1x3x128xf32, #tpu.memory_space<vmem>>, vector<1x1x128xf32>
    %28 = vector.shape_cast %27 : vector<1x1x128xf32> to vector<128xf32>
    %29 = vector.shape_cast %26 : vector<128xf32> to vector<1x1x128xf32>
    tpu.vector_store %arg4[%c0_22, %c1_23, %c0_24], %29 {strides = array<i32>} : memref<1x3x128xf32, #tpu.memory_space<vmem>>, vector<1x1x128xf32>,
    %c0_25 = arith.constant 0 : index
    %c2 = arith.constant 2 : index
    %c0_26 = arith.constant 0 : index
    %30 = vector.load %arg4[%c0_25, %c2, %c0_26] : memref<1x3x128xf32, #tpu.memory_space<vmem>>, vector<1x1x128xf32>
    %31 = vector.shape_cast %30 : vector<1x1x128xf32> to vector<128xf32>
    %cst_27 = arith.constant dense<0.000000e+00> : vector<128xf32>
    %32 = vector.multi_reduction <add>, %8, %cst_27 [0] : vector<2x128xf32> to vector<128xf32>
    %33 = arith.addf %31, %32 : vector<128xf32>
    %c0_28 = arith.constant 0 : index
    %c2_29 = arith.constant 2 : index
    %c0_30 = arith.constant 0 : index
    %34 = vector.load %arg4[%c0_28, %c2_29, %c0_30] : memref<1x3x128xf32, #tpu.memory_space<vmem>>, vector<1x1x128xf32>
    %35 = vector.shape_cast %34 : vector<1x1x128xf32> to vector<128xf32>
    %36 = vector.shape_cast %33 : vector<128xf32> to vector<1x1x128xf32>
    tpu.vector_store %arg4[%c0_28, %c2_29, %c0_30], %36 {strides = array<i32>} : memref<1x3x128xf32, #tpu.memory_space<vmem>>, vector<1x1x128xf32>,
    return
  }
  func.func @transform_0(%arg0: i32, %arg1: i32) -> (i32, i32, i32, i32) {
    %c0_i32 = arith.constant 0 : i32
    %c0_i32_0 = arith.constant 0 : i32
    %c0_i32_1 = arith.constant 0 : i32
    return %arg0, %c0_i32, %arg1, %c0_i32_0 : i32, i32, i32, i32
  }
  func.func @transform_1(%arg0: i32, %arg1: i32) -> (i32, i32, i32) {
    %c0_i32 = arith.constant 0 : i32
    %c0_i32_0 = arith.constant 0 : i32
    return %arg0, %arg1, %c0_i32 : i32, i32, i32
  }
  func.func @transform_2(%arg0: i32, %arg1: i32) -> (i32, i32, i32) {
    %c0_i32 = arith.constant 0 : i32
    %c0_i32_0 = arith.constant 0 : i32
    %c0_i32_1 = arith.constant 0 : i32
    return %arg0, %c0_i32, %c0_i32_0 : i32, i32, i32
  }
}

</mosaic_0001>

<llo_original>
// kernel: tpu_custom_call.1
$region0: #{tpu_custom_call.1}
  #allocation0 [shape = 'u32[]', space=smem, size = 0x4, offset = 0x4, fixed_abs, tag = 'smem constant byte address 0x4 - core index']
  #allocation1 [shape = 'u32[144,128]{1,0:T(1,128)}', space=vmem, size = 0x12000, scoped, tag = 'internal scratch']
  %s0 = inlined_call_operand.hbm [shape: f32[2,2,2,128], index: 0, kind: input, shape index: {}]
  %s1 = inlined_call_operand.hbm [shape: f32[2,2,128], index: 1, kind: input, shape index: {}]
  %s2 = inlined_call_operand.vmem [shape: f32[2,3,128], index: 2, kind: output, shape index: {}]
  %s3 = sld [smem:[#allocation0]]
  $region53: #{tpu_custom_call.1} parent=0
    _
  %s5 = ssub.s32 1, %s3
  %s6 = scalar_select 0, %s5, %s3
  $region1: #{tpu_custom_call.1} parent=0
    #allocation2 [shape = 'u8[4096]{0}', space=vmem, size = 0x1000, scoped, tag = 'input window, operand 0']
    #allocation3 [shape = 's32[2]{0}', space=sflag, size = 0x8, scoped, tag = 'scoped memory for tpu_custom_call.1']
    #allocation4 [shape = 'u8[2048]{0}', space=vmem, size = 0x800, scoped, tag = 'input window, operand 1']
    #allocation5 [shape = 's32[2]{0}', space=sflag, size = 0x8, scoped, tag = 'scoped memory for tpu_custom_call.1']
    %7 = vsyncpa [#allocation3], 0
    %s8 = scalar_lea.sflag [#allocation3], 1
    %9 = vsyncpa %s8, 0
    %10 = vsyncpa [#allocation5], 0
    %s11 = scalar_lea.sflag [#allocation5], 1
    %12 = vsyncpa %s11, 0
    loop: start=0, step=1, limit=4
    $region2: #{tpu_custom_call.1} parent=1 // loop_pre_header
      _
    $region3: #{tpu_custom_call.1} parent=1 // loop_header
      %s14 = sphi 0, %s18
      %p15 = scmp.ge.s32.totalorder %s14, 4
      %s21 = sphi 0, %s33
      %s22 = sphi 0, %s29
      %s23 = sphi 0, %s21
      %s24 = sphi 0, %s22
      %s25 = sphi 0, %s23
      %s26 = sphi 0, %s24
      %s38 = sphi 0, %s40
      %s41 = sphi 0, %s38
      %s42 = sphi 0, %s41
      %s58 = sphi 0, %s42
      %s66 = sphi 0, %s68
      %s69 = sphi 0, %s66
      %s70 = sphi 0, %s69
      %s86 = sphi 0, %s70
      %s92 = sphi 0, %s94
      %s95 = sphi 0, %s92
      %s96 = sphi 0, %s95
      %s112 = sphi 0, %s96
    $region4: #{tpu_custom_call.1} parent=1 // loop_header_branch
      %17 = sbr.rel (%p15) target = $region8
    $region5: #{tpu_custom_call.1} parent=1 // loop_body
      %s19 = ssub.s32 %s14, 1
      %s20 = ssub.s32 %s14, 2
      %s27 = sadd.s32 1, %s22
      %p28 = scmp.ge.s32.totalorder %s27, 1
      %s29 = scalar_select %p28, 0, %s27
      %s30 = sadd.s32 1, %s21
      %s31 = scalar_select %p28, %s30, %s21
      %p32 = scmp.ge.s32.totalorder %s31, 2
      %s33 = scalar_select %p32, 0, %s31
      %s34 = ssub.s32 %s21, %s33
      %s35 = ssub.s32 %s22, %s29
      %s36 = sor.u32 %s34, %s35
      %p37 = scmp.eq.s32.totalorder %s36, 0
      %s39 = sadd.s32 %s38, 1
      %s40 = scalar_select %p37, %s38, %s39
      %p43 = pneg %p37
      %p44 = scmp.eq.s32.totalorder %s14, 1
      %p45 = por %p43, %p44
      %p46 = scmp.ne.s32.totalorder %s38, %s41
      %p47 = scmp.eq.s32.totalorder %s14, 0
      %p48 = por %p46, %p47
      %p49 = scmp.ne.s32.totalorder %s38, %s41
      %p50 = scmp.eq.s32.totalorder %s19, 1
      %p51 = por %p49, %p50
      %p52 = scmp.ne.s32.totalorder %s41, %s42
      %p53 = scmp.eq.s32.totalorder %s19, 0
      %p54 = por %p52, %p53
      %p55 = scmp.ne.s32.totalorder %s41, %s42
      %p56 = scmp.eq.s32.totalorder %s20, 1
      %p57 = por %p55, %p56
      %p59 = scmp.ne.s32.totalorder %s42, %s58
      %p60 = scmp.eq.s32.totalorder %s20, 0
      %p61 = por %p59, %p60
      %s62 = ssub.s32 %s21, %s33
      %s63 = ssub.s32 %s22, %s29
      %s64 = sor.u32 %s62, %s63
      %p65 = scmp.eq.s32.totalorder %s64, 0
      %s67 = sadd.s32 %s66, 1
      %s68 = scalar_select %p65, %s66, %s67
      %p71 = pneg %p65
      %p72 = scmp.eq.s32.totalorder %s14, 1
      %p73 = por %p71, %p72
      %p74 = scmp.ne.s32.totalorder %s66, %s69
      %p75 = scmp.eq.s32.totalorder %s14, 0
      %p76 = por %p74, %p75
      %p77 = scmp.ne.s32.totalorder %s66, %s69
      %p78 = scmp.eq.s32.totalorder %s19, 1
      %p79 = por %p77, %p78
      %p80 = scmp.ne.s32.totalorder %s69, %s70
      %p81 = scmp.eq.s32.totalorder %s19, 0
      %p82 = por %p80, %p81
      %p83 = scmp.ne.s32.totalorder %s69, %s70
      %p84 = scmp.eq.s32.totalorder %s20, 1
      %p85 = por %p83, %p84
      %p87 = scmp.ne.s32.totalorder %s70, %s86
      %p88 = scmp.eq.s32.totalorder %s20, 0
      %p89 = por %p87, %p88
      %s90 = ssub.s32 %s21, %s33
      %p91 = scmp.eq.s32.totalorder %s90, 0
      %s93 = sadd.s32 %s92, 1
      %s94 = scalar_select %p91, %s92, %s93
      %p97 = pneg %p91
      %p98 = scmp.eq.s32.totalorder %s14, 1
      %p99 = por %p97, %p98
      %p100 = scmp.ne.s32.totalorder %s92, %s95
      %p101 = scmp.eq.s32.totalorder %s14, 0
      %p102 = por %p100, %p101
      %p103 = scmp.ne.s32.totalorder %s92, %s95
      %p104 = scmp.eq.s32.totalorder %s19, 1
      %p105 = por %p103, %p104
      %p106 = scmp.ne.s32.totalorder %s95, %s96
      %p107 = scmp.eq.s32.totalorder %s19, 0
      %p108 = por %p106, %p107
      %p109 = scmp.ne.s32.totalorder %s95, %s96
      %p110 = scmp.eq.s32.totalorder %s20, 1
      %p111 = por %p109, %p110
      %p113 = scmp.ne.s32.totalorder %s96, %s112
      %p114 = scmp.eq.s32.totalorder %s20, 0
      %p115 = por %p113, %p114
      %p116 = scmp.le.s32.totalorder 1, %s14
      %p117 = scmp.lt.s32.totalorder %s14, 3
      %p118 = pnand %p116, %p117
      %p119 = pneg %p118
      // Predicated region
      $region9: #{tpu_custom_call.1} parent=5 // pred_check
        _
      $region10: #{tpu_custom_call.1} parent=5 // pred_check_branch
        %121 = sbr.rel (%p118) target = $region12
      $region11: #{tpu_custom_call.1} parent=5 // pred_region
        %s122 = ssub.s32 %s14, 1
      $region12: #{tpu_custom_call.1} parent=5 // pred_fallthru
        _
      %p123 = scmp.lt.s32.totalorder %s14, 2
      // Predicated region
      $region13: #{tpu_custom_call.1} parent=5 // pred_check
        %p124 = pneg %p123
      $region14: #{tpu_custom_call.1} parent=5 // pred_check_branch
        %126 = sbr.rel (%p124) target = $region16
      $region15: #{tpu_custom_call.1} parent=5 // pred_region
        // Predicated region
        $region17: #{tpu_custom_call.1} parent=15 // pred_check
          %p127 = pneg %p48
        $region18: #{tpu_custom_call.1} parent=15 // pred_check_branch
          %129 = sbr.rel (%p127) target = $region20
        $region19: #{tpu_custom_call.1} parent=15 // pred_region
          %s130 = sand.u32 %s38, 1
          %s131 = scalar_lea.sflag [#allocation3], %s130
          %s132 = sand.u32 %s38, 1
          %s133 = smul.addr %s132, 4
          %s134 = scalar_lea.vmem [#allocation2], %s133
          %s136 = ssub.s32 64, 64
          %137 = vsyncadd %s131, %s136
          %s138 = smul.addr %s21, 2
          %s139 = sadd.s32 %s22, %s138
          %s140 = smul.addr %s139, 32
          %s141 = scalar_lea.hbm %s0, %s140
          %s142 = sshll.u32 %s134, 4
          %s143 = int_to_ptr.vmem [resolvable:$true] %s142
          %148 = dma.hbm_to_vmem [thread:$0]  %s141, 64, %s143, %s131, 32, 32, 2
        $region20: #{tpu_custom_call.1} parent=15 // pred_fallthru
          _
        // Predicated region
        $region21: #{tpu_custom_call.1} parent=15 // pred_check
          %p149 = pneg %p76
        $region22: #{tpu_custom_call.1} parent=15 // pred_check_branch
          %151 = sbr.rel (%p149) target = $region24
        $region23: #{tpu_custom_call.1} parent=15 // pred_region
          %s152 = sand.u32 %s66, 1
          %s153 = scalar_lea.sflag [#allocation5], %s152
          %s154 = sand.u32 %s66, 1
          %s155 = smul.addr %s154, 2
          %s156 = scalar_lea.vmem [#allocation4], %s155
          %s158 = ssub.s32 32, 32
          %159 = vsyncadd %s153, %s158
          %s160 = sadd.s32 %s22, %s21
          %s161 = smul.addr %s160, 32
          %s162 = scalar_lea.hbm %s1, %s161
          %s164 = sshll.u32 %s156, 4
          %s165 = int_to_ptr.vmem [resolvable:$true] %s164
          %167 = dma.hbm_to_vmem [thread:$0]  %s162, 32, %s165, %s153
        $region24: #{tpu_custom_call.1} parent=15 // pred_fallthru
          _
      $region16: #{tpu_custom_call.1} parent=5 // pred_fallthru
        _
      %p168 = scmp.le.s32.totalorder 1, %s14
      %p169 = scmp.lt.s32.totalorder %s14, 3
      %p170 = pnand %p168, %p169
      %p171 = pneg %p170
      // Predicated region
      $region25: #{tpu_custom_call.1} parent=5 // pred_check
        _
      $region26: #{tpu_custom_call.1} parent=5 // pred_check_branch
        %173 = sbr.rel (%p170) target = $region28
      $region27: #{tpu_custom_call.1} parent=5 // pred_region
        %s174 = ssub.s32 %s14, 1
        %s175 = sand.u32 %s41, 1
        %s176 = scalar_lea.sflag [#allocation3], %s175
        %s177 = sand.u32 %s41, 1
        %s178 = smul.addr %s177, 4
        %s179 = scalar_lea.vmem [#allocation2], %s178
        // Predicated region
        $region29: #{tpu_custom_call.1} parent=27 // pred_check
          %p180 = pneg %p54
        $region30: #{tpu_custom_call.1} parent=27 // pred_check_branch
          %182 = sbr.rel (%p180) target = $region32
        $region31: #{tpu_custom_call.1} parent=27 // pred_region
          %183 = dma.done %s176, 64
        $region32: #{tpu_custom_call.1} parent=27 // pred_fallthru
          _
        %s184 = sand.u32 %s69, 1
        %s185 = scalar_lea.sflag [#allocation5], %s184
        %s186 = sand.u32 %s69, 1
        %s187 = smul.addr %s186, 2
        %s188 = scalar_lea.vmem [#allocation4], %s187
        // Predicated region
        $region33: #{tpu_custom_call.1} parent=27 // pred_check
          %p189 = pneg %p82
        $region34: #{tpu_custom_call.1} parent=27 // pred_check_branch
          %191 = sbr.rel (%p189) target = $region36
        $region35: #{tpu_custom_call.1} parent=27 // pred_region
          %192 = dma.done %s185, 32
        $region36: #{tpu_custom_call.1} parent=27 // pred_fallthru
          _
        %s193 = sand.u32 %s41, 1
        %s194 = scalar_lea.sflag [#allocation3], %s193
        %s195 = sand.u32 %s41, 1
        %s196 = smul.addr %s195, 4
        %s197 = scalar_lea.vmem [#allocation2], %s196
        %p198 = pneg %p54
        %p199 = pneg %p51
        %s200 = sand.u32 %s69, 1
        %s201 = scalar_lea.sflag [#allocation5], %s200
        %s202 = sand.u32 %s69, 1
        %s203 = smul.addr %s202, 2
        %s204 = scalar_lea.vmem [#allocation4], %s203
        %p205 = pneg %p82
        %p206 = pneg %p79
        %p207 = pneg %p108
        %p208 = pneg %p105
        %p209 = scmp.lt.s32.totalorder %s23, 1
        %s210 = scalar_select %p209, %s23, 1
        %s211 = smul.addr %s210, 4
        %s212 = scalar_lea.vmem %s2, %s211
        %p213 = scmp.lt.s32.totalorder %s23, 1
        %s214 = scalar_select %p213, %s23, 1
        %s215 = smul.addr %s214, 4
        %s216 = scalar_lea.vmem %s2, %s215
        %p217 = scmp.eq.s32.totalorder %s24, 0
        // Predicated region
        $region37: #{tpu_custom_call.1} parent=27 // pred_check
          %p218 = pneg %p217
        $region38: #{tpu_custom_call.1} parent=27 // pred_check_branch
          %220 = sbr.rel (%p218) target = $region40
        $region39: #{tpu_custom_call.1} parent=27 // pred_region
          %221 = vst [vmem:[%s216] sm:$0x7] 0.0
        $region40: #{tpu_custom_call.1} parent=27 // pred_fallthru
          _
        %v222 = vld [vmem:[%s179] sm:$0x3]
        %s223 = scalar_lea.vmem %s179, 2 [#allocation2]
        %v224 = vld [vmem:[%s223] sm:$0x3]
        %v225 = vld [vmem:[%s188] sm:$0x3]
        %v226 = vsub.f32 %v222, %v224
        %v227 = vmul.f32 %v226, 1.442695
        %v228 = vpow.pop %v227
        %v229 = vadd.f32 %v228, 1.0
        %v230 = vrcp.pop %v229
        %v231 = vmul.f32 1.0, %v230
        %v232 = vld [vmem:[%s216] sm:$0x1]
        %v233 = vmul.f32 %v231, %v225
        %vm234 = vcmask 1041408
        %v235 = vsel %vm234, %v233, 0.0
        %v236 = vrot.slane %v235, 4
        %v237 = vadd.f32 %v235, %v236
        %v238 = vrot.slane %v237, 2
        %v239 = vadd.f32 %v237, %v238
        %v240 = vrot.slane %v239, 1
        %v241 = vadd.f32 %v239, %v240
        %v242 = vadd.f32 %v232, %v241
        %243 = vst [vmem:[%s216] sm:$0x1] %v242
        %v244 = vld [vmem:[%s216 + $0x1] sm:$0x1]
        %v245 = vsel %vm234, %v231, 0.0
        %v246 = vrot.slane %v245, 4
        %v247 = vadd.f32 %v245, %v246
        %v248 = vrot.slane %v247, 2
        %v249 = vadd.f32 %v247, %v248
        %v250 = vrot.slane %v249, 1
        %v251 = vadd.f32 %v249, %v250
        %v252 = vadd.f32 %v244, %v251
        %253 = vst [vmem:[%s216 + $0x1] sm:$0x1] %v252
        %v254 = vld [vmem:[%s216 + $0x2] sm:$0x1]
        %v255 = vsel %vm234, %v225, 0.0
        %v256 = vrot.slane %v255, 4
        %v257 = vadd.f32 %v255, %v256
        %v258 = vrot.slane %v257, 2
        %v259 = vadd.f32 %v257, %v258
        %v260 = vrot.slane %v259, 1
        %v261 = vadd.f32 %v259, %v260
        %v262 = vadd.f32 %v254, %v261
        %263 = vst [vmem:[%s216 + $0x2] sm:$0x1] %v262
        %p264 = scmp.lt.s32.totalorder %s23, 1
        %s265 = scalar_select %p264, %s23, 1
        %s266 = smul.addr %s265, 4
        %s267 = scalar_lea.vmem %s2, %s266
        // Predicated region
        $region41: #{tpu_custom_call.1} parent=27 // pred_check
          %p268 = pneg %p105
        $region42: #{tpu_custom_call.1} parent=27 // pred_check_branch
          %270 = sbr.rel (%p268) target = $region44
        $region43: #{tpu_custom_call.1} parent=27 // pred_region
          _
        $region44: #{tpu_custom_call.1} parent=27 // pred_fallthru
          _
      $region28: #{tpu_custom_call.1} parent=5 // pred_fallthru
        _
      %p271 = scmp.le.s32.totalorder 2, %s14
      // Predicated region
      $region45: #{tpu_custom_call.1} parent=5 // pred_check
        %p272 = pneg %p271
      $region46: #{tpu_custom_call.1} parent=5 // pred_check_branch
        %274 = sbr.rel (%p272) target = $region48
      $region47: #{tpu_custom_call.1} parent=5 // pred_region
        %s275 = ssub.s32 %s14, 2
        // Predicated region
        $region49: #{tpu_custom_call.1} parent=47 // pred_check
          %p276 = pneg %p111
        $region50: #{tpu_custom_call.1} parent=47 // pred_check_branch
          %278 = sbr.rel (%p276) target = $region52
        $region51: #{tpu_custom_call.1} parent=47 // pred_region
          %p279 = scmp.lt.s32.totalorder %s25, 1
          %s280 = scalar_select %p279, %s25, 1
          %s281 = smul.addr %s280, 4
          %s282 = scalar_lea.vmem %s2, %s281
        $region52: #{tpu_custom_call.1} parent=47 // pred_fallthru
          _
      $region48: #{tpu_custom_call.1} parent=5 // pred_fallthru
        _
    $region6: #{tpu_custom_call.1} parent=1 // loop_footer
      %s18 = sadd.s32 1, %s14
    $region7: #{tpu_custom_call.1} parent=1 // loop_footer_branch
      %13 = sbr.rel target = $region3
    $region8: #{tpu_custom_call.1} parent=1 // loop_exit
      _
    %283 = vsyncpa [#allocation3], 1
    %s284 = scalar_lea.sflag [#allocation3], 1
    %285 = vsyncpa %s284, 1
    %286 = vsyncpa [#allocation5], 1
    %s287 = scalar_lea.sflag [#allocation5], 1
    %288 = vsyncpa %s287, 1

</llo_original>
